<compile_context>
chip_gen: v7x
topology: tpu7x:2x2x1
jax: 0.10.0
libtpu: 0.0.40
codegen_flags: <defaults>
</compile_context>

<pallas_src>
import functools

import jax
import jax.numpy as jnp
from jax.experimental import pallas as pl
from jax.experimental.pallas import tpu as pltpu


def _mean_pool_kernel(x_ref, o_ref, *, inv_t):
    x = x_ref[...].astype(jnp.float32)                     # (TB, T, TD)
    o_ref[...] = (jnp.sum(x, axis=1) * inv_t).astype(o_ref.dtype)


def _max_pool_kernel(x_ref, o_ref):
    o_ref[...] = jnp.max(x_ref[...], axis=1).astype(o_ref.dtype)


_VMEM_BUDGET = 12 * 1024 * 1024   # conservative: inside the 16 MiB v5e scoped default


def _choose_tiles(b, t, d, itemsize):
    """Pick (TB, TD) so double-buffered in+out tiles fit the VMEM budget.

    TB is a multiple of 8 (or the full batch); TD is a multiple of 128 (or the
    full d_model)."""
    def per(tb, td):                                       # 2x: double buffering
        return 2 * tb * (t + 1) * td * itemsize

    td = d
    if per(min(b, 8), td) > _VMEM_BUDGET:
        # Even an 8-row slab of the full feature dim is too big: tile d_model.
        td = ((_VMEM_BUDGET // max(1, per(min(b, 8), 1))) // 128) * 128
        td = max(128, min(td, d))

    tb_max = _VMEM_BUDGET // max(1, per(1, td))
    if tb_max >= b:
        tb = b
    elif tb_max >= 8:
        tb = (tb_max // 8) * 8
    else:
        tb = 8   # over budget only for extreme token counts; wrapper raises vmem limit
    return tb, td


def pooling_layer(x, kind, *, tile_b=None, tile_d=None):
    """x: (batch, token, d_model) -> pooled output (see PoolingLayer)."""
    if x.ndim != 3:
        raise ValueError(f"expected (batch, token, d_model), got {x.shape}")
    B, T, D = x.shape

    if kind == "flatten":
        # Pure metadata op for a contiguous row-major array; no kernel needed.
        return x.reshape(B, T * D)

    if kind == "mean":
        kernel = functools.partial(_mean_pool_kernel, inv_t=1.0 / T)
    elif kind == "max":
        kernel = _max_pool_kernel
    else:
        raise ValueError(f"Unknown pooling kind {kind}")

    itemsize = x.dtype.itemsize
    auto_tb, auto_td = _choose_tiles(B, T, D, itemsize)
    TB = auto_tb if tile_b is None else tile_b
    TD = auto_td if tile_d is None else tile_d

    cp_kwargs = dict(dimension_semantics=("parallel", "parallel"))
    vmem_need = 2 * TB * (T + 1) * TD * itemsize
    if vmem_need > _VMEM_BUDGET:
        # Extremely long token axis: request more scoped VMEM (capped for v7x).
        cp_kwargs["vmem_limit_bytes"] = int(min(vmem_need + (4 << 20), 60 << 20))

    cost = pl.CostEstimate(
        flops=int(B) * int(T) * int(D),
        transcendentals=0,
        bytes_accessed=int(B) * int(T) * int(D) * itemsize
        + int(B) * int(D) * itemsize,
    )

    return pl.pallas_call(
        kernel,
        out_shape=jax.ShapeDtypeStruct((B, D), x.dtype),
        grid=(pl.cdiv(B, TB), pl.cdiv(D, TD)),
        in_specs=[pl.BlockSpec((TB, T, TD), lambda i, j: (i, 0, j))],
        out_specs=pl.BlockSpec((TB, TD), lambda i, j: (i, j)),
        compiler_params=pltpu.CompilerParams(**cp_kwargs),
        cost_estimate=cost,
    )(x)


def _reference(x, kind):
    """Pure-JAX replica of the PyTorch forward (for verification)."""
    if kind == "mean":
        return jnp.mean(x, axis=1)
    if kind == "max":
        return jnp.max(x, axis=1)
    if kind == "flatten":
        return x.reshape(x.shape[0], -1)
    raise ValueError(kind)


if __name__ == "__main__":
    key = jax.random.PRNGKey(0)

    # Small shape consistent with the module: (batch, token, d_model).
    batch, token, d_model = 2, 8, 32
    x = jax.random.normal(key, (batch, token, d_model), dtype=jnp.float32)

    expected = {
        "mean": (batch, d_model),
        "max": (batch, d_model),
        "flatten": (batch, token * d_model),
    }
    for kind in ("mean", "max", "flatten"):
        out = jax.block_until_ready(pooling_layer(x, kind))
        ref = _reference(x, kind)
        assert out.shape == expected[kind], (kind, out.shape)
        assert jnp.allclose(out, ref, atol=1e-5, rtol=1e-5), f"mismatch for {kind}"

    # Exercise the multi-tile / ragged-last-block path with forced small tiles.
    x2 = jax.random.normal(jax.random.PRNGKey(0), (20, 12, 256), dtype=jnp.float32)
    for kind in ("mean", "max"):
        out = jax.block_until_ready(pooling_layer(x2, kind, tile_b=8, tile_d=128))
        ref = _reference(x2, kind)
        assert out.shape == ref.shape, (kind, out.shape)
        assert jnp.allclose(out, ref, atol=1e-5, rtol=1e-5), f"tiled mismatch: {kind}"

    print("KERNEL_OK")
</pallas_src>

<mosaic_0001>
module attributes {stable_mosaic.version = 11 : i64} {
  func.func @_mean_pool_kernel(%arg0: i32, %arg1: i32, %arg2: memref<2x8x32xf32, #tpu.memory_space<vmem>>, %arg3: memref<2x32xf32, #tpu.memory_space<vmem>>) attributes {dimension_semantics = [#tpu.dimension_semantics<parallel>, #tpu.dimension_semantics<parallel>], iteration_bounds = array<i64: 1, 1>, scalar_prefetch = 0 : i64, scratch_operands = 0 : i64, tpu.core_type = #tpu.core_type<tc>, window_params = [{transform_indices = @transform_0, window_bounds = array<i64: 2, 8, 32>}, {transform_indices = @transform_1, window_bounds = array<i64: 2, 32>}]} {
    %c0 = arith.constant 0 : index
    %c0_0 = arith.constant 0 : index
    %c0_1 = arith.constant 0 : index
    %0 = vector.load %arg2[%c0, %c0_0, %c0_1] : memref<2x8x32xf32, #tpu.memory_space<vmem>>, vector<2x8x32xf32>
    %cst = arith.constant dense<0.000000e+00> : vector<2x32xf32>
    %1 = vector.multi_reduction <add>, %0, %cst [1] : vector<2x8x32xf32> to vector<2x32xf32>
    %cst_2 = arith.constant 1.250000e-01 : f32
    %2 = vector.broadcast %cst_2 : f32 to vector<2x32xf32>
    %3 = arith.mulf %1, %2 : vector<2x32xf32>
    %c0_3 = arith.constant 0 : index
    %c0_4 = arith.constant 0 : index
    %4 = vector.load %arg3[%c0_3, %c0_4] : memref<2x32xf32, #tpu.memory_space<vmem>>, vector<2x32xf32>
    tpu.vector_store %arg3[%c0_3, %c0_4], %3 {strides = array<i32>} : memref<2x32xf32, #tpu.memory_space<vmem>>, vector<2x32xf32>,
    return
  }
  func.func @transform_0(%arg0: i32, %arg1: i32) -> (i32, i32, i32) {
    %c0_i32 = arith.constant 0 : i32
    %c0_i32_0 = arith.constant 0 : i32
    return %arg0, %c0_i32, %arg1 : i32, i32, i32
  }
  func.func @transform_1(%arg0: i32, %arg1: i32) -> (i32, i32) {
    %c0_i32 = arith.constant 0 : i32
    return %arg0, %arg1 : i32, i32
  }
}

</mosaic_0001>

<llo_original>
// kernel: tpu_custom_call.1
$region0: #{tpu_custom_call.1}
  #allocation0 [shape = 'u32[]', space=smem, size = 0x4, offset = 0x4, fixed_abs, tag = 'smem constant byte address 0x4 - core index']
  #allocation1 [shape = 'u32[144,128]{1,0:T(1,128)}', space=vmem, size = 0x12000, scoped, tag = 'internal scratch']
  %s0 = inlined_call_operand.hbm [shape: f32[2,8,32], index: 0, kind: input, shape index: {}]
  %s1 = inlined_call_operand.hbm [shape: f32[2,32], index: 1, kind: output, shape index: {}]
  %s2 = sld [smem:[#allocation0]]
  $region18: #{tpu_custom_call.1} parent=0
    _
  %s4 = ssub.s32 1, %s2
  %s5 = scalar_select 0, %s4, %s2
  $region1: #{tpu_custom_call.1} parent=0
    #allocation2 [shape = 'u8[8192]{0}', space=vmem, size = 0x2000, scoped, tag = 'input window, operand 0, single buffered']
    #allocation3 [shape = 's32[1]{0}', space=sflag, size = 0x4, scoped, tag = 'scoped memory for tpu_custom_call.1']
    #allocation4 [shape = 's32[1]{0}', space=sflag, size = 0x4, scoped, tag = 'scoped memory for tpu_custom_call.1']
    #allocation5 [shape = 'u8[1024]{0}', space=vmem, size = 0x400, scoped, tag = 'output window, operand 0, single buffered']
    %6 = vsyncpa [#allocation3], 0
    %7 = vsyncpa [#allocation4], 0
    // Predicated region
    $region2: #{tpu_custom_call.1} parent=1 // pred_check
      _
    $region3: #{tpu_custom_call.1} parent=1 // pred_check_branch
      %9 = sbr.rel (0) target = $region5
    $region4: #{tpu_custom_call.1} parent=1 // pred_region
      %s11 = ssub.s32 256, 256
      %12 = vsyncadd [#allocation3], %s11
      %s13 = sshll.u32 [#allocation2], 4
      %s14 = int_to_ptr.vmem [resolvable:$true] %s13
      %19 = dma.hbm_to_vmem [thread:$0]  %s0, 256, %s14, [#allocation3], 128, 128, 8
    $region5: #{tpu_custom_call.1} parent=1 // pred_fallthru
      _
    // Predicated region
    $region6: #{tpu_custom_call.1} parent=1 // pred_check
      _
    $region7: #{tpu_custom_call.1} parent=1 // pred_check_branch
      %21 = sbr.rel (0) target = $region9
    $region8: #{tpu_custom_call.1} parent=1 // pred_region
      %22 = dma.done [#allocation3], 256
    $region9: #{tpu_custom_call.1} parent=1 // pred_fallthru
      _
    %v23 = vld [vmem:[#allocation2] sm:$0xff]
    %v24 = vld [vmem:[#allocation2 + $0x8] sm:$0xff]
    %vm25 = vcmask 261120
    %v26 = vsel %vm25, %v23, 0.0
    %v27 = vrot.slane %v26, 4
    %v28 = vadd.f32 %v26, %v27
    %v29 = vrot.slane %v28, 2
    %v30 = vadd.f32 %v28, %v29
    %v31 = vrot.slane %v30, 1
    %v32 = vadd.f32 %v30, %v31
    %v33 = vsel %vm25, %v24, 0.0
    %v34 = vrot.slane %v33, 4
    %v35 = vadd.f32 %v33, %v34
    %v36 = vrot.slane %v35, 2
    %v37 = vadd.f32 %v35, %v36
    %v38 = vrot.slane %v37, 1
    %v39 = vadd.f32 %v37, %v38
    %v40 = vmul.f32 %v32, 0.125
    %v41 = vmul.f32 %v39, 0.125
    %vm44 = vcmask 1041409
    %v45 = vsel %vm44, %v41, %v40
    %vm47 = vcmask 254976
    %48 = vst.msk [vmem:[#allocation5] sm:$0x3] %vm47, %v45
    // Predicated region
    $region10: #{tpu_custom_call.1} parent=1 // pred_check
      _
    $region11: #{tpu_custom_call.1} parent=1 // pred_check_branch
      %50 = sbr.rel (0) target = $region13
    $region12: #{tpu_custom_call.1} parent=1 // pred_region
      %s52 = ssub.s32 32, 32
      %53 = vsyncadd [#allocation4], %s52
      %s55 = sshll.u32 [#allocation5], 4
      %s56 = int_to_ptr.vmem [resolvable:$true] %s55
      %58 = dma.vmem_to_hbm [thread:$0]  %s56, 32, %s1, [#allocation4]
    $region13: #{tpu_custom_call.1} parent=1 // pred_fallthru
      _
    // Predicated region
    $region14: #{tpu_custom_call.1} parent=1 // pred_check
      _
    $region15: #{tpu_custom_call.1} parent=1 // pred_check_branch
      %60 = sbr.rel (0) target = $region17
    $region16: #{tpu_custom_call.1} parent=1 // pred_region
      %61 = dma.done [#allocation4], 32
    $region17: #{tpu_custom_call.1} parent=1 // pred_fallthru
      _
    %62 = vsyncpa [#allocation3], 1
    %63 = vsyncpa [#allocation4], 1

</llo_original>
